<compile_context>
chip_gen: v7x
topology: tpu7x:2x2x1
jax: 0.10.0
libtpu: 0.0.40
codegen_flags: <defaults>
</compile_context>

<pallas_src>
import functools

import jax
import jax.numpy as jnp
from jax.experimental import pallas as pl
from jax.experimental.pallas import tpu as pltpu


def _round_up(x: int, m: int) -> int:
    return ((x + m - 1) // m) * m


# -----------------------------------------------------------------------------
# Kernel: whole MLP on one batch tile, activations never leave VMEM/vregs.
# -----------------------------------------------------------------------------
def _fused_mlp_kernel(*refs, num_mid: int):
    if num_mid:
        x_ref, w1_ref, wm_ref, wl_ref, bh_ref, bl_ref, o_ref = refs
    else:
        x_ref, w1_ref, wl_ref, bh_ref, bl_ref, o_ref = refs
        wm_ref = None
    cd = x_ref.dtype

    # First Linear + ReLU   (K_pad -> H_pad)
    y = jnp.dot(x_ref[...], w1_ref[...], preferred_element_type=jnp.float32)
    y = y + bh_ref[0:1, :].astype(jnp.float32)
    h = jnp.maximum(y, 0.0).astype(cd)

    # Middle Linear + ReLU layers (H_pad -> H_pad), static unroll (small L).
    # TODO(synk): for >~16 layers switch to lax.fori_loop(..., unroll=True)
    # over a dynamically indexed wm_ref[l] to bound code size / live ranges.
    for l in range(num_mid):
        y = jnp.dot(h, wm_ref[l], preferred_element_type=jnp.float32)
        y = y + bh_ref[l + 1:l + 2, :].astype(jnp.float32)
        h = jnp.maximum(y, 0.0).astype(cd)

    # Last Linear (H_pad -> C_pad), no activation.
    y = jnp.dot(h, wl_ref[...], preferred_element_type=jnp.float32)
    o_ref[...] = (y + bl_ref[...].astype(jnp.float32)).astype(o_ref.dtype)


# -----------------------------------------------------------------------------
# One-time packing (call once at init, NOT per forward).
# -----------------------------------------------------------------------------
def pack_params(params, dtype=jnp.float32):
    """Zero-pad per-layer weights/biases to lane-dense (multiple of 128) dims.

    Padding is exact: padded weight rows/cols and bias entries are zero and
    ReLU(0) = 0, so padded feature columns stay zero through the network and
    the final slice removes them.
    """
    L = len(params)
    assert L >= 2, "DeepNN has at least 2 Linear layers"
    K = params[0][0].shape[0]
    H = params[0][0].shape[1]
    C = params[-1][0].shape[1]
    Kp, Hp, Cp = _round_up(K, 128), _round_up(H, 128), _round_up(C, 128)

    def pad2(a, rows, cols):
        a = a.astype(dtype)
        return jnp.pad(a, ((0, rows - a.shape[0]), (0, cols - a.shape[1])))

    w_first = pad2(params[0][0], Kp, Hp)                       # [Kp, Hp]
    w_last = pad2(params[-1][0], Hp, Cp)                       # [Hp, Cp]
    mids = params[1:-1]
    num_mid = len(mids)
    w_mid = (jnp.stack([pad2(w, Hp, Hp) for (w, _) in mids])
             if num_mid else None)                             # [num_mid, Hp, Hp]

    # Biases of first + middle layers all have width Hp; pack rows, pad the
    # row count to a multiple of 8 sublanes.
    Lh = _round_up(num_mid + 1, 8)
    b_hidden = jnp.zeros((Lh, Hp), dtype)
    for i, (_, b) in enumerate(params[:-1]):
        b_hidden = b_hidden.at[i, : b.shape[1]].set(b[0].astype(dtype))
    b_last = pad2(params[-1][1], 1, Cp)                        # [1, Cp]

    meta = dict(num_mid=num_mid, num_classes=C)
    return (w_first, w_mid, w_last, b_hidden, b_last), meta


# -----------------------------------------------------------------------------
# Jitted forward.
# -----------------------------------------------------------------------------
@functools.partial(jax.jit, static_argnames=("num_mid", "num_classes", "block_b"))
def deepnn_forward(x, w_first, w_mid, w_last, b_hidden, b_last, *,
                   num_mid, num_classes, block_b=512):
    """Fused forward pass. x: [B, input_size] -> [B, num_classes]."""
    cd = w_first.dtype                      # compute dtype (f32 or bf16)
    Kp, Hp = w_first.shape
    Cp = w_last.shape[1]
    B, K = x.shape

    # Batch tile: multiple of 8 sublanes, capped at block_b; pad ragged batch.
    B8 = _round_up(B, 8)
    bb = min(_round_up(block_b, 8), B8)
    Bp = _round_up(B8, bb)

    xp = jnp.pad(x.astype(cd), ((0, Bp - B), (0, Kp - K)))

    kernel = functools.partial(_fused_mlp_kernel, num_mid=num_mid)

    resident = pl.Buffered(1)               # constant index_map -> single buffer
    weight_args = [w_first] + ([w_mid] if num_mid else []) + [w_last, b_hidden, b_last]
    weight_specs = (
        [pl.BlockSpec((Kp, Hp), lambda i: (0, 0), pipeline_mode=resident)]
        + ([pl.BlockSpec((num_mid, Hp, Hp), lambda i: (0, 0, 0),
                         pipeline_mode=resident)] if num_mid else [])
        + [pl.BlockSpec((Hp, Cp), lambda i: (0, 0), pipeline_mode=resident),
           pl.BlockSpec(b_hidden.shape, lambda i: (0, 0), pipeline_mode=resident),
           pl.BlockSpec((1, Cp), lambda i: (0, 0), pipeline_mode=resident)]
    )

    # VMEM footprint (weights single-buffered, activations double-buffered).
    cb = jnp.dtype(cd).itemsize
    ob = jnp.dtype(x.dtype).itemsize
    w_bytes = (w_first.size + (w_mid.size if num_mid else 0) + w_last.size
               + b_hidden.size + b_last.size) * cb
    act_bytes = 2 * bb * Kp * cb + 2 * bb * Cp * ob
    scratch_bytes = 6 * bb * Hp * 4
    vmem_limit = int((w_bytes + act_bytes + scratch_bytes) * 1.5) + (4 << 20)
    vmem_limit = min(max(vmem_limit, 16 << 20), 100 << 20)

    flops = 2 * Bp * (Kp * Hp + num_mid * Hp * Hp + Hp * Cp)
    bytes_accessed = int(w_bytes + Bp * Kp * cb + Bp * Cp * ob)
    cost = pl.CostEstimate(flops=int(flops), transcendentals=0,
                           bytes_accessed=bytes_accessed)

    out = pl.pallas_call(
        kernel,
        out_shape=jax.ShapeDtypeStruct((Bp, Cp), x.dtype),
        grid_spec=pltpu.PrefetchScalarGridSpec(
            num_scalar_prefetch=0,
            grid=(Bp // bb,),
            in_specs=[pl.BlockSpec((bb, Kp), lambda i: (i, 0))] + weight_specs,
            out_specs=pl.BlockSpec((bb, Cp), lambda i: (i, 0)),
        ),
        compiler_params=pltpu.CompilerParams(
            dimension_semantics=("parallel",),   # batch tiles split across TCs
            vmem_limit_bytes=vmem_limit,
        ),
        cost_estimate=cost,
    )(xp, *weight_args)

    return out[:B, :num_classes]


# -----------------------------------------------------------------------------
# Reference + init (PyTorch-equivalent semantics).
# -----------------------------------------------------------------------------
def init_deepnn_params(key, input_size, hidden_size, num_hidden_layers, num_classes):
    """Deterministic init matching nn.Linear's uniform(-1/sqrt(fan_in), +)."""
    dims = [input_size] + [hidden_size] * (num_hidden_layers - 1) + [num_classes]
    params = []
    for fan_in, fan_out in zip(dims[:-1], dims[1:]):
        key, kw, kb = jax.random.split(key, 3)
        bound = 1.0 / jnp.sqrt(jnp.float32(fan_in))
        # stored directly in [in, out] layout (already transposed vs PyTorch)
        w_t = jax.random.uniform(kw, (fan_in, fan_out), jnp.float32, -bound, bound)
        b = jax.random.uniform(kb, (1, fan_out), jnp.float32, -bound, bound)
        params.append((w_t, b))
    return params


def deepnn_reference(x, params):
    n = len(params)
    for i, (w_t, b) in enumerate(params):
        x = x @ w_t + b
        if i < n - 1:
            x = jnp.maximum(x, 0.0)
    return x


if __name__ == "__main__":
    # Small, module-consistent shapes.
    batch = 8
    input_size = 32
    hidden_size = 32
    num_hidden_layers = 4   # => 4 Linear layers total (first, 2 middle, last)
    num_classes = 16

    key = jax.random.PRNGKey(0)
    key, kx = jax.random.split(key)
    x = jax.random.normal(kx, (batch, input_size), jnp.float32)

    params = init_deepnn_params(
        key, input_size, hidden_size, num_hidden_layers, num_classes
    )
    ref = deepnn_reference(x, params)

    # f32 path: packing done once, jitted forward; exact vs reference.
    (w1, wm, wl, bh, bl), meta = pack_params(params, jnp.float32)
    out = deepnn_forward(x, w1, wm, wl, bh, bl,
                         num_mid=meta["num_mid"], num_classes=meta["num_classes"])
    out = jax.block_until_ready(out)
    assert out.shape == (batch, num_classes)
    assert jnp.allclose(out, ref, atol=1e-5, rtol=1e-5)

    # bf16 weights/activations (v6e/v7x fast path), f32 MXU accumulation:
    # loose tolerance vs the f32 reference.
    (w1b, wmb, wlb, bhb, blb), metab = pack_params(params, jnp.bfloat16)
    out_bf16 = deepnn_forward(x, w1b, wmb, wlb, bhb, blb,
                              num_mid=metab["num_mid"],
                              num_classes=metab["num_classes"])
    out_bf16 = jax.block_until_ready(out_bf16)
    assert jnp.allclose(out_bf16, ref, atol=1e-1, rtol=1e-1)

    # num_hidden_layers=2 (no middle layers) exercises the num_mid=0 path.
    params2 = init_deepnn_params(key, input_size, hidden_size, 2, num_classes)
    (w1c, wmc, wlc, bhc, blc), meta2 = pack_params(params2, jnp.float32)
    out2 = deepnn_forward(x, w1c, wmc, wlc, bhc, blc,
                          num_mid=meta2["num_mid"],
                          num_classes=meta2["num_classes"])
    out2 = jax.block_until_ready(out2)
    assert jnp.allclose(out2, deepnn_reference(x, params2), atol=1e-5, rtol=1e-5)

    print("KERNEL_OK")
</pallas_src>

<mosaic_0001>
module attributes {stable_mosaic.version = 11 : i64} {
  func.func @_fused_mlp_kernel(%arg0: i32, %arg1: memref<8x128xf32, #tpu.memory_space<vmem>>, %arg2: memref<128x128xf32, #tpu.memory_space<vmem>>, %arg3: memref<2x128x128xf32, #tpu.memory_space<vmem>>, %arg4: memref<128x128xf32, #tpu.memory_space<vmem>>, %arg5: memref<8x128xf32, #tpu.memory_space<vmem>>, %arg6: memref<1x128xf32, #tpu.memory_space<vmem>>, %arg7: memref<8x128xf32, #tpu.memory_space<vmem>>) attributes {dimension_semantics = [#tpu.dimension_semantics<parallel>], iteration_bounds = array<i64: 1>, scalar_prefetch = 0 : i64, scratch_operands = 0 : i64, tpu.core_type = #tpu.core_type<tc>, window_params = [{transform_indices = @transform_0, window_bounds = array<i64: 8, 128>}, {pipeline_mode = #tpu.pipeline_mode<synchronous>, transform_indices = @transform_1, window_bounds = array<i64: 128, 128>}, {pipeline_mode = #tpu.pipeline_mode<synchronous>, transform_indices = @transform_2, window_bounds = array<i64: 2, 128, 128>}, {pipeline_mode = #tpu.pipeline_mode<synchronous>, transform_indices = @transform_3, window_bounds = array<i64: 128, 128>}, {pipeline_mode = #tpu.pipeline_mode<synchronous>, transform_indices = @transform_4, window_bounds = array<i64: 8, 128>}, {pipeline_mode = #tpu.pipeline_mode<synchronous>, transform_indices = @transform_5, window_bounds = array<i64: 1, 128>}, {transform_indices = @transform_6, window_bounds = array<i64: 8, 128>}]} {
    %c0 = arith.constant 0 : index
    %c0_0 = arith.constant 0 : index
    %0 = vector.load %arg1[%c0, %c0_0] : memref<8x128xf32, #tpu.memory_space<vmem>>, vector<8x128xf32>
    %c0_1 = arith.constant 0 : index
    %c0_2 = arith.constant 0 : index
    %1 = vector.load %arg2[%c0_1, %c0_2] : memref<128x128xf32, #tpu.memory_space<vmem>>, vector<128x128xf32>
    %cst = arith.constant dense<0.000000e+00> : vector<8x128xf32>
    %2 = tpu.matmul %0, %1, %cst {dimension_numbers = #tpu.dot_dimension_numbers<[1], [0], [0], [1], [0, 0, 1, 1], [], []>} : vector<8x128xf32>, vector<128x128xf32>, vector<8x128xf32> -> vector<8x128xf32>
    %c0_3 = arith.constant 0 : index
    %c0_4 = arith.constant 0 : index
    %3 = vector.load %arg5[%c0_3, %c0_4] : memref<8x128xf32, #tpu.memory_space<vmem>>, vector<1x128xf32>
    %4 = vector.broadcast %3 : vector<1x128xf32> to vector<8x128xf32>
    %5 = arith.addf %2, %4 : vector<8x128xf32>
    %cst_5 = arith.constant 0.000000e+00 : f32
    %6 = vector.broadcast %cst_5 : f32 to vector<8x128xf32>
    %7 = arith.maximumf %5, %6 : vector<8x128xf32>
    %c0_6 = arith.constant 0 : index
    %c0_7 = arith.constant 0 : index
    %c0_8 = arith.constant 0 : index
    %8 = vector.load %arg3[%c0_6, %c0_7, %c0_8] : memref<2x128x128xf32, #tpu.memory_space<vmem>>, vector<1x128x128xf32>
    %9 = vector.shape_cast %8 : vector<1x128x128xf32> to vector<128x128xf32>
    %cst_9 = arith.constant dense<0.000000e+00> : vector<8x128xf32>
    %10 = tpu.matmul %7, %9, %cst_9 {dimension_numbers = #tpu.dot_dimension_numbers<[1], [0], [0], [1], [0, 0, 1, 1], [], []>} : vector<8x128xf32>, vector<128x128xf32>, vector<8x128xf32> -> vector<8x128xf32>
    %c1 = arith.constant 1 : index
    %c0_10 = arith.constant 0 : index
    %11 = vector.load %arg5[%c1, %c0_10] : memref<8x128xf32, #tpu.memory_space<vmem>>, vector<1x128xf32>
    %12 = vector.broadcast %11 : vector<1x128xf32> to vector<8x128xf32>
    %13 = arith.addf %10, %12 : vector<8x128xf32>
    %cst_11 = arith.constant 0.000000e+00 : f32
    %14 = vector.broadcast %cst_11 : f32 to vector<8x128xf32>
    %15 = arith.maximumf %13, %14 : vector<8x128xf32>
    %c1_12 = arith.constant 1 : index
    %c0_13 = arith.constant 0 : index
    %c0_14 = arith.constant 0 : index
    %16 = vector.load %arg3[%c1_12, %c0_13, %c0_14] : memref<2x128x128xf32, #tpu.memory_space<vmem>>, vector<1x128x128xf32>
    %17 = vector.shape_cast %16 : vector<1x128x128xf32> to vector<128x128xf32>
    %cst_15 = arith.constant dense<0.000000e+00> : vector<8x128xf32>
    %18 = tpu.matmul %15, %17, %cst_15 {dimension_numbers = #tpu.dot_dimension_numbers<[1], [0], [0], [1], [0, 0, 1, 1], [], []>} : vector<8x128xf32>, vector<128x128xf32>, vector<8x128xf32> -> vector<8x128xf32>
    %c2 = arith.constant 2 : index
    %c0_16 = arith.constant 0 : index
    %19 = vector.load %arg5[%c2, %c0_16] : memref<8x128xf32, #tpu.memory_space<vmem>>, vector<1x128xf32>
    %20 = vector.broadcast %19 : vector<1x128xf32> to vector<8x128xf32>
    %21 = arith.addf %18, %20 : vector<8x128xf32>
    %cst_17 = arith.constant 0.000000e+00 : f32
    %22 = vector.broadcast %cst_17 : f32 to vector<8x128xf32>
    %23 = arith.maximumf %21, %22 : vector<8x128xf32>
    %c0_18 = arith.constant 0 : index
    %c0_19 = arith.constant 0 : index
    %24 = vector.load %arg4[%c0_18, %c0_19] : memref<128x128xf32, #tpu.memory_space<vmem>>, vector<128x128xf32>
    %cst_20 = arith.constant dense<0.000000e+00> : vector<8x128xf32>
    %25 = tpu.matmul %23, %24, %cst_20 {dimension_numbers = #tpu.dot_dimension_numbers<[1], [0], [0], [1], [0, 0, 1, 1], [], []>} : vector<8x128xf32>, vector<128x128xf32>, vector<8x128xf32> -> vector<8x128xf32>
    %c0_21 = arith.constant 0 : index
    %c0_22 = arith.constant 0 : index
    %26 = vector.load %arg6[%c0_21, %c0_22] : memref<1x128xf32, #tpu.memory_space<vmem>>, vector<1x128xf32>
    %27 = vector.broadcast %26 : vector<1x128xf32> to vector<8x128xf32>
    %28 = arith.addf %25, %27 : vector<8x128xf32>
    %c0_23 = arith.constant 0 : index
    %c0_24 = arith.constant 0 : index
    %29 = vector.load %arg7[%c0_23, %c0_24] : memref<8x128xf32, #tpu.memory_space<vmem>>, vector<8x128xf32>
    tpu.vector_store %arg7[%c0_23, %c0_24], %28 {strides = array<i32>} : memref<8x128xf32, #tpu.memory_space<vmem>>, vector<8x128xf32>,
    return
  }
  func.func @transform_0(%arg0: i32) -> (i32, i32) {
    %c0_i32 = arith.constant 0 : i32
    %c0_i32_0 = arith.constant 0 : i32
    return %arg0, %c0_i32 : i32, i32
  }
  func.func @transform_1(%arg0: i32) -> (i32, i32) {
    %c0_i32 = arith.constant 0 : i32
    %c0_i32_0 = arith.constant 0 : i32
    %c0_i32_1 = arith.constant 0 : i32
    return %c0_i32, %c0_i32_0 : i32, i32
  }
  func.func @transform_2(%arg0: i32) -> (i32, i32, i32) {
    %c0_i32 = arith.constant 0 : i32
    %c0_i32_0 = arith.constant 0 : i32
    %c0_i32_1 = arith.constant 0 : i32
    %c0_i32_2 = arith.constant 0 : i32
    return %c0_i32, %c0_i32_0, %c0_i32_1 : i32, i32, i32
  }
  func.func @transform_3(%arg0: i32) -> (i32, i32) {
    %c0_i32 = arith.constant 0 : i32
    %c0_i32_0 = arith.constant 0 : i32
    %c0_i32_1 = arith.constant 0 : i32
    return %c0_i32, %c0_i32_0 : i32, i32
  }
  func.func @transform_4(%arg0: i32) -> (i32, i32) {
    %c0_i32 = arith.constant 0 : i32
    %c0_i32_0 = arith.constant 0 : i32
    %c0_i32_1 = arith.constant 0 : i32
    return %c0_i32, %c0_i32_0 : i32, i32
  }
  func.func @transform_5(%arg0: i32) -> (i32, i32) {
    %c0_i32 = arith.constant 0 : i32
    %c0_i32_0 = arith.constant 0 : i32
    %c0_i32_1 = arith.constant 0 : i32
    return %c0_i32, %c0_i32_0 : i32, i32
  }
  func.func @transform_6(%arg0: i32) -> (i32, i32) {
    %c0_i32 = arith.constant 0 : i32
    %c0_i32_0 = arith.constant 0 : i32
    return %arg0, %c0_i32 : i32, i32
  }
}

</mosaic_0001>

<llo_original>
// kernel: deepnn_forward.1
$region0: #{deepnn_forward.1}
  #allocation0 [shape = 'u32[]', space=smem, size = 0x4, offset = 0x4, fixed_abs, tag = 'smem constant byte address 0x4 - core index']
  #allocation1 [shape = 'u32[144,128]{1,0:T(1,128)}', space=vmem, size = 0x12000, scoped, tag = 'internal scratch']
  %s0 = inlined_call_operand.vmem [shape: f32[8,128], index: 0, kind: input, shape index: {}]
  %s1 = inlined_call_operand.hbm [shape: f32[128,128], index: 1, kind: input, shape index: {}]
  %s2 = inlined_call_operand.hbm [shape: f32[2,128,128], index: 2, kind: input, shape index: {}]
  %s3 = inlined_call_operand.hbm [shape: f32[128,128], index: 3, kind: input, shape index: {}]
  %s4 = inlined_call_operand.vmem [shape: f32[8,128], index: 4, kind: input, shape index: {}]
  %s5 = inlined_call_operand.vmem [shape: f32[1,128], index: 5, kind: input, shape index: {}]
  %s6 = inlined_call_operand.hbm [shape: f32[8,128], index: 6, kind: output, shape index: {}]
  %s7 = sld [smem:[#allocation0]]
  $region46: #{deepnn_forward.1} parent=0
    _
  %s9 = ssub.s32 1, %s7
  %s10 = scalar_select 0, %s9, %s7
  $region1: #{deepnn_forward.1} parent=0
    #allocation2 [shape = 'u8[65536]{0}', space=vmem, size = 0x10000, scoped, tag = 'input window, operand 1, single buffered']
    #allocation3 [shape = 's32[1]{0}', space=sflag, size = 0x4, scoped, tag = 'scoped memory for deepnn_forward.1']
    #allocation4 [shape = 's32[1]{0}', space=sflag, size = 0x4, scoped, tag = 'scoped memory for deepnn_forward.1']
    #allocation5 [shape = 'u8[131072]{0}', space=vmem, size = 0x20000, scoped, tag = 'input window, operand 2, single buffered']
    #allocation6 [shape = 's32[1]{0}', space=sflag, size = 0x4, scoped, tag = 'scoped memory for deepnn_forward.1']
    #allocation7 [shape = 'u8[65536]{0}', space=vmem, size = 0x10000, scoped, tag = 'input window, operand 3, single buffered']
    #allocation8 [shape = 'u8[4096]{0}', space=vmem, size = 0x1000, scoped, tag = 'output window, operand 0, single buffered']
    %11 = vsyncpa [#allocation3], 0
    %12 = vsyncpa [#allocation6], 0
    %13 = vsyncpa [#allocation4], 0
    // Predicated region
    $region2: #{deepnn_forward.1} parent=1 // pred_check
      _
    $region3: #{deepnn_forward.1} parent=1 // pred_check_branch
      %15 = sbr.rel (0) target = $region5
    $region4: #{deepnn_forward.1} parent=1 // pred_region
      _
    $region5: #{deepnn_forward.1} parent=1 // pred_fallthru
      _
    // Predicated region
    $region6: #{deepnn_forward.1} parent=1 // pred_check
      _
    $region7: #{deepnn_forward.1} parent=1 // pred_check_branch
      %17 = sbr.rel (0) target = $region9
    $region8: #{deepnn_forward.1} parent=1 // pred_region
      %s19 = ssub.s32 2048, 2048
      %20 = vsyncadd [#allocation3], %s19
      %s21 = sshll.u32 [#allocation2], 4
      %s22 = int_to_ptr.vmem [resolvable:$true] %s21
      %27 = dma.hbm_to_vmem [thread:$0]  %s1, 2048, %s22, [#allocation3], 128, 128, 8
    $region9: #{deepnn_forward.1} parent=1 // pred_fallthru
      _
    // Predicated region
    $region10: #{deepnn_forward.1} parent=1 // pred_check
      _
    $region11: #{deepnn_forward.1} parent=1 // pred_check_branch
      %29 = sbr.rel (0) target = $region13
    $region12: #{deepnn_forward.1} parent=1 // pred_region
      %s31 = ssub.s32 4096, 4096
      %32 = vsyncadd [#allocation6], %s31
      %s33 = sshll.u32 [#allocation5], 4
      %s34 = int_to_ptr.vmem [resolvable:$true] %s33
      %39 = dma.hbm_to_vmem [thread:$0]  %s2, 4096, %s34, [#allocation6], 128, 128, 8
    $region13: #{deepnn_forward.1} parent=1 // pred_fallthru
      _
    // Predicated region
    $region14: #{deepnn_forward.1} parent=1 // pred_check
      _
    $region15: #{deepnn_forward.1} parent=1 // pred_check_branch
      %41 = sbr.rel (0) target = $region17
    $region16: #{deepnn_forward.1} parent=1 // pred_region
      %s43 = ssub.s32 2048, 2048
      %44 = vsyncadd [#allocation6], %s43
      %s45 = sshll.u32 [#allocation7], 4
      %s46 = int_to_ptr.vmem [resolvable:$true] %s45
      %51 = dma.hbm_to_vmem [thread:$0]  %s3, 2048, %s46, [#allocation6], 128, 128, 8
    $region17: #{deepnn_forward.1} parent=1 // pred_fallthru
      _
    // Predicated region
    $region18: #{deepnn_forward.1} parent=1 // pred_check
      _
    $region19: #{deepnn_forward.1} parent=1 // pred_check_branch
      %53 = sbr.rel (0) target = $region21
    $region20: #{deepnn_forward.1} parent=1 // pred_region
      _
    $region21: #{deepnn_forward.1} parent=1 // pred_fallthru
      _
    // Predicated region
    $region22: #{deepnn_forward.1} parent=1 // pred_check
      _
    $region23: #{deepnn_forward.1} parent=1 // pred_check_branch
      %55 = sbr.rel (0) target = $region25
    $region24: #{deepnn_forward.1} parent=1 // pred_region
      _
    $region25: #{deepnn_forward.1} parent=1 // pred_fallthru
      _
    // Predicated region
    $region26: #{deepnn_forward.1} parent=1 // pred_check
      _
    $region27: #{deepnn_forward.1} parent=1 // pred_check_branch
      %57 = sbr.rel (0) target = $region29
    $region28: #{deepnn_forward.1} parent=1 // pred_region
      %58 = dma.done [#allocation3], 2048
    $region29: #{deepnn_forward.1} parent=1 // pred_fallthru
      _
    // Predicated region
    $region30: #{deepnn_forward.1} parent=1 // pred_check
      _
    $region31: #{deepnn_forward.1} parent=1 // pred_check_branch
      %60 = sbr.rel (0) target = $region33
    $region32: #{deepnn_forward.1} parent=1 // pred_region
      %61 = dma.done [#allocation6], 4096
    $region33: #{deepnn_forward.1} parent=1 // pred_fallthru
      _
    // Predicated region
    $region34: #{deepnn_forward.1} parent=1 // pred_check
      _
    $region35: #{deepnn_forward.1} parent=1 // pred_check_branch
      %63 = sbr.rel (0) target = $region37
    $region36: #{deepnn_forward.1} parent=1 // pred_region
      %64 = dma.done [#allocation6], 2048
    $region37: #{deepnn_forward.1} parent=1 // pred_fallthru
      _
    %v65 = vld [vmem:[%s0] sm:$0xff]
    %v66 = vld [vmem:[#allocation2] sm:$0xff]
    %v67 = vld [vmem:[#allocation2 + $0x8] sm:$0xff]
    %v68 = vld [vmem:[#allocation2 + $0x10] sm:$0xff]
    %v69 = vld [vmem:[#allocation2 + $0x18] sm:$0xff]
    %v70 = vld [vmem:[#allocation2 + $0x20] sm:$0xff]
    %v71 = vld [vmem:[#allocation2 + $0x28] sm:$0xff]
    %v72 = vld [vmem:[#allocation2 + $0x30] sm:$0xff]
    %v73 = vld [vmem:[#allocation2 + $0x38] sm:$0xff]
    %v74 = vld [vmem:[#allocation2 + $0x40] sm:$0xff]
    %v75 = vld [vmem:[#allocation2 + $0x48] sm:$0xff]
    %v76 = vld [vmem:[#allocation2 + $0x50] sm:$0xff]
    %v77 = vld [vmem:[#allocation2 + $0x58] sm:$0xff]
    %v78 = vld [vmem:[#allocation2 + $0x60] sm:$0xff]
    %v79 = vld [vmem:[#allocation2 + $0x68] sm:$0xff]
    %v80 = vld [vmem:[#allocation2 + $0x70] sm:$0xff]
    %v81 = vld [vmem:[#allocation2 + $0x78] sm:$0xff]
    %v82 = vld [vmem:[%s4] sm:$0x1]
    %v83 = vlaneseq
    %v84 = vshrl.u32 %v83, 7
    %v85 = vsub.s32 0, %v84
    %v86 = vrot.slane %v82, %v85
    %87 = vmatprep.subr.mxu0 0.0
    %88 = vmatpush1.msra.mxu0 %v66
    %89 = vmatprep.subr.mxu0 0.0
    %90 = vmatpush1.msra.mxu0 %v67
    %91 = vmatprep.subr.mxu0 0.0
    %92 = vmatpush1.msra.mxu0 %v68
    %93 = vmatprep.subr.mxu0 0.0
    %94 = vmatpush1.msra.mxu0 %v69
    %95 = vmatprep.subr.mxu0 0.0
    %96 = vmatpush1.msra.mxu0 %v70
    %97 = vmatprep.subr.mxu0 0.0
    %98 = vmatpush1.msra.mxu0 %v71
    %99 = vmatprep.subr.mxu0 0.0
    %100 = vmatpush1.msra.mxu0 %v72
    %101 = vmatprep.subr.mxu0 0.0
    %102 = vmatpush1.msra.mxu0 %v73
    %103 = vmatprep.subr.mxu0 0.0
    %104 = vmatpush1.msra.mxu0 %v74
    %105 = vmatprep.subr.mxu0 0.0
    %106 = vmatpush1.msra.mxu0 %v75
    %107 = vmatprep.subr.mxu0 0.0
    %108 = vmatpush1.msra.mxu0 %v76
    %109 = vmatprep.subr.mxu0 0.0
    %110 = vmatpush1.msra.mxu0 %v77
    %111 = vmatprep.subr.mxu0 0.0
    %112 = vmatpush1.msra.mxu0 %v78
    %113 = vmatprep.subr.mxu0 0.0
    %114 = vmatpush1.msra.mxu0 %v79
    %115 = vmatprep.subr.mxu0 0.0
    %116 = vmatpush1.msra.mxu0 %v80
    %117 = vmatprep.subr.mxu0 0.0
    %118 = vmatpush1.msra.mxu0 %v81
    %119 = vmatprep.subr.mxu0 0.0
    %120 = vmatpush1.msra.mxu0 0.0
    %121 = vmatprep.subr.mxu0 0.0
    %122 = vmatpush1.msra.mxu0 0.0
    %123 = vmatprep.subr.mxu0 0.0
    %124 = vmatpush1.msra.mxu0 0.0
    %125 = vmatprep.subr.mxu0 0.0
    %126 = vmatpush1.msra.mxu0 0.0
    %127 = vmatprep.subr.mxu0 0.0
    %128 = vmatpush1.msra.mxu0 0.0
    %129 = vmatprep.subr.mxu0 0.0
    %130 = vmatpush1.msra.mxu0 0.0
    %131 = vmatprep.subr.mxu0 0.0
    %132 = vmatpush1.msra.mxu0 0.0
    %133 = vmatprep.subr.mxu0 0.0
    %134 = vmatpush1.msra.mxu0 0.0
    %135 = vmatprep.subr.mxu0 0.0
    %136 = vmatpush1.msra.mxu0 0.0
    %137 = vmatprep.subr.mxu0 0.0
    %138 = vmatpush1.msra.mxu0 0.0
    %139 = vmatprep.subr.mxu0 0.0
    %140 = vmatpush1.msra.mxu0 0.0
    %141 = vmatprep.subr.mxu0 0.0
    %142 = vmatpush1.msra.mxu0 0.0
    %143 = vmatprep.subr.mxu0 0.0
    %144 = vmatpush1.msra.mxu0 0.0
    %145 = vmatprep.subr.mxu0 0.0
    %146 = vmatpush1.msra.mxu0 0.0
    %147 = vmatprep.subr.mxu0 0.0
    %148 = vmatpush1.msra.mxu0 0.0
    %149 = vmatprep.subr.mxu0 0.0
    %150 = vmatpush1.msra.mxu0 0.0
    %151 = vmatprep.mubr.f32.mxu0 0.0
    %152 = vmatmul.mubr.f32.gmra.mrb[0].mxu0 %v65
    %v153 = vpop.f32.mrb[0].mxu0
    %v154 = vadd.f32 %v86, %v153
    %v155 = vpop.f32.mrb[0].mxu0
    %156 = vdwg.mxu0
    %v157 = vmax.f32 %v154, 0.0
    %v158 = vld [vmem:[#allocation5] sm:$0xff]
    %v159 = vld [vmem:[#allocation5 + $0x8] sm:$0xff]
    %v160 = vld [vmem:[#allocation5 + $0x10] sm:$0xff]
    %v161 = vld [vmem:[#allocation5 + $0x18] sm:$0xff]
    %v162 = vld [vmem:[#allocation5 + $0x20] sm:$0xff]
    %v163 = vld [vmem:[#allocation5 + $0x28] sm:$0xff]
    %v164 = vld [vmem:[#allocation5 + $0x30] sm:$0xff]
    %v165 = vld [vmem:[#allocation5 + $0x38] sm:$0xff]
    %v166 = vld [vmem:[#allocation5 + $0x40] sm:$0xff]
    %v167 = vld [vmem:[#allocation5 + $0x48] sm:$0xff]
    %v168 = vld [vmem:[#allocation5 + $0x50] sm:$0xff]
    %v169 = vld [vmem:[#allocation5 + $0x58] sm:$0xff]
    %v170 = vld [vmem:[#allocation5 + $0x60] sm:$0xff]
    %v171 = vld [vmem:[#allocation5 + $0x68] sm:$0xff]
    %v172 = vld [vmem:[#allocation5 + $0x70] sm:$0xff]
    %v173 = vld [vmem:[#allocation5 + $0x78] sm:$0xff]
    %v174 = vld [vmem:[%s4 + $0x1] sm:$0x1]
    %v175 = vlaneseq
    %v176 = vshrl.u32 %v175, 7
    %v177 = vsub.s32 0, %v176
    %v178 = vrot.slane %v174, %v177
    %179 = vmatprep.subr.mxu0 0.0
    %180 = vmatpush1.msra.mxu0 %v158
    %181 = vmatprep.subr.mxu0 0.0
    %182 = vmatpush1.msra.mxu0 %v159
    %183 = vmatprep.subr.mxu0 0.0
    %184 = vmatpush1.msra.mxu0 %v160
    %185 = vmatprep.subr.mxu0 0.0
    %186 = vmatpush1.msra.mxu0 %v161
    %187 = vmatprep.subr.mxu0 0.0
    %188 = vmatpush1.msra.mxu0 %v162
    %189 = vmatprep.subr.mxu0 0.0
    %190 = vmatpush1.msra.mxu0 %v163
    %191 = vmatprep.subr.mxu0 0.0
    %192 = vmatpush1.msra.mxu0 %v164
    %193 = vmatprep.subr.mxu0 0.0
    %194 = vmatpush1.msra.mxu0 %v165
    %195 = vmatprep.subr.mxu0 0.0
    %196 = vmatpush1.msra.mxu0 %v166
    %197 = vmatprep.subr.mxu0 0.0
    %198 = vmatpush1.msra.mxu0 %v167
    %199 = vmatprep.subr.mxu0 0.0
    %200 = vmatpush1.msra.mxu0 %v168
    %201 = vmatprep.subr.mxu0 0.0
    %202 = vmatpush1.msra.mxu0 %v169
    %203 = vmatprep.subr.mxu0 0.0
    %204 = vmatpush1.msra.mxu0 %v170
    %205 = vmatprep.subr.mxu0 0.0
    %206 = vmatpush1.msra.mxu0 %v171
    %207 = vmatprep.subr.mxu0 0.0
    %208 = vmatpush1.msra.mxu0 %v172
    %209 = vmatprep.subr.mxu0 0.0
    %210 = vmatpush1.msra.mxu0 %v173
    %211 = vmatprep.subr.mxu0 0.0
    %212 = vmatpush1.msra.mxu0 0.0
    %213 = vmatprep.subr.mxu0 0.0
    %214 = vmatpush1.msra.mxu0 0.0
    %215 = vmatprep.subr.mxu0 0.0
    %216 = vmatpush1.msra.mxu0 0.0
    %217 = vmatprep.subr.mxu0 0.0
    %218 = vmatpush1.msra.mxu0 0.0
    %219 = vmatprep.subr.mxu0 0.0
    %220 = vmatpush1.msra.mxu0 0.0
    %221 = vmatprep.subr.mxu0 0.0
    %222 = vmatpush1.msra.mxu0 0.0
    %223 = vmatprep.subr.mxu0 0.0
    %224 = vmatpush1.msra.mxu0 0.0
    %225 = vmatprep.subr.mxu0 0.0
    %226 = vmatpush1.msra.mxu0 0.0
    %227 = vmatprep.subr.mxu0 0.0
    %228 = vmatpush1.msra.mxu0 0.0
    %229 = vmatprep.subr.mxu0 0.0
    %230 = vmatpush1.msra.mxu0 0.0
    %231 = vmatprep.subr.mxu0 0.0
    %232 = vmatpush1.msra.mxu0 0.0
    %233 = vmatprep.subr.mxu0 0.0
    %234 = vmatpush1.msra.mxu0 0.0
    %235 = vmatprep.subr.mxu0 0.0
    %236 = vmatpush1.msra.mxu0 0.0
    %237 = vmatprep.subr.mxu0 0.0
    %238 = vmatpush1.msra.mxu0 0.0
    %239 = vmatprep.subr.mxu0 0.0
    %240 = vmatpush1.msra.mxu0 0.0
    %241 = vmatprep.subr.mxu0 0.0
    %242 = vmatpush1.msra.mxu0 0.0
    %243 = vmatprep.mubr.f32.mxu0 0.0
    %244 = vmatmul.mubr.f32.gmra.mrb[0].mxu0 %v157
    %v245 = vpop.f32.mrb[0].mxu0
    %v246 = vadd.f32 %v178, %v245
    %v247 = vpop.f32.mrb[0].mxu0
    %248 = vdwg.mxu0
    %v249 = vmax.f32 %v246, 0.0
    %s250 = scalar_lea.vmem [#allocation5], 128
    %v251 = vld [vmem:[%s250] sm:$0xff]
    %v252 = vld [vmem:[%s250 + $0x8] sm:$0xff]
    %v253 = vld [vmem:[%s250 + $0x10] sm:$0xff]
    %v254 = vld [vmem:[%s250 + $0x18] sm:$0xff]
    %v255 = vld [vmem:[%s250 + $0x20] sm:$0xff]
    %v256 = vld [vmem:[%s250 + $0x28] sm:$0xff]
    %v257 = vld [vmem:[%s250 + $0x30] sm:$0xff]
    %v258 = vld [vmem:[%s250 + $0x38] sm:$0xff]
    %v259 = vld [vmem:[%s250 + $0x40] sm:$0xff]
    %v260 = vld [vmem:[%s250 + $0x48] sm:$0xff]
    %v261 = vld [vmem:[%s250 + $0x50] sm:$0xff]
    %v262 = vld [vmem:[%s250 + $0x58] sm:$0xff]
    %v263 = vld [vmem:[%s250 + $0x60] sm:$0xff]
    %v264 = vld [vmem:[%s250 + $0x68] sm:$0xff]
    %v265 = vld [vmem:[%s250 + $0x70] sm:$0xff]
    %v266 = vld [vmem:[%s250 + $0x78] sm:$0xff]
    %v267 = vld [vmem:[%s4 + $0x2] sm:$0x1]
    %v268 = vlaneseq
    %v269 = vshrl.u32 %v268, 7
    %v270 = vsub.s32 0, %v269
    %v271 = vrot.slane %v267, %v270
    %272 = vmatprep.subr.mxu0 0.0
    %273 = vmatpush1.msra.mxu0 %v251
    %274 = vmatprep.subr.mxu0 0.0
    %275 = vmatpush1.msra.mxu0 %v252
    %276 = vmatprep.subr.mxu0 0.0
    %277 = vmatpush1.msra.mxu0 %v253
    %278 = vmatprep.subr.mxu0 0.0
    %279 = vmatpush1.msra.mxu0 %v254
    %280 = vmatprep.subr.mxu0 0.0
    %281 = vmatpush1.msra.mxu0 %v255
    %282 = vmatprep.subr.mxu0 0.0
    %283 = vmatpush1.msra.mxu0 %v256
    %284 = vmatprep.subr.mxu0 0.0
    %285 = vmatpush1.msra.mxu0 %v257
    %286 = vmatprep.subr.mxu0 0.0
    %287 = vmatpush1.msra.mxu0 %v258
    %288 = vmatprep.subr.mxu0 0.0
    %289 = vmatpush1.msra.mxu0 %v259
    %290 = vmatprep.subr.mxu0 0.0
    %291 = vmatpush1.msra.mxu0 %v260
    %292 = vmatprep.subr.mxu0 0.0
    %293 = vmatpush1.msra.mxu0 %v261
    %294 = vmatprep.subr.mxu0 0.0
    %295 = vmatpush1.msra.mxu0 %v262
    %296 = vmatprep.subr.mxu0 0.0
    %297 = vmatpush1.msra.mxu0 %v263
    %298 = vmatprep.subr.mxu0 0.0
    %299 = vmatpush1.msra.mxu0 %v264
    %300 = vmatprep.subr.mxu0 0.0
    %301 = vmatpush1.msra.mxu0 %v265
    %302 = vmatprep.subr.mxu0 0.0
    %303 = vmatpush1.msra.mxu0 %v266
    %304 = vmatprep.subr.mxu0 0.0
    %305 = vmatpush1.msra.mxu0 0.0
    %306 = vmatprep.subr.mxu0 0.0
    %307 = vmatpush1.msra.mxu0 0.0
    %308 = vmatprep.subr.mxu0 0.0
    %309 = vmatpush1.msra.mxu0 0.0
    %310 = vmatprep.subr.mxu0 0.0
    %311 = vmatpush1.msra.mxu0 0.0
    %312 = vmatprep.subr.mxu0 0.0
    %313 = vmatpush1.msra.mxu0 0.0
    %314 = vmatprep.subr.mxu0 0.0
    %315 = vmatpush1.msra.mxu0 0.0
    %316 = vmatprep.subr.mxu0 0.0
    %317 = vmatpush1.msra.mxu0 0.0
    %318 = vmatprep.subr.mxu0 0.0
    %319 = vmatpush1.msra.mxu0 0.0
    %320 = vmatprep.subr.mxu0 0.0
    %321 = vmatpush1.msra.mxu0 0.0
    %322 = vmatprep.subr.mxu0 0.0
    %323 = vmatpush1.msra.mxu0 0.0
    %324 = vmatprep.subr.mxu0 0.0
    %325 = vmatpush1.msra.mxu0 0.0
    %326 = vmatprep.subr.mxu0 0.0
    %327 = vmatpush1.msra.mxu0 0.0
    %328 = vmatprep.subr.mxu0 0.0
    %329 = vmatpush1.msra.mxu0 0.0
    %330 = vmatprep.subr.mxu0 0.0
    %331 = vmatpush1.msra.mxu0 0.0
    %332 = vmatprep.subr.mxu0 0.0
    %333 = vmatpush1.msra.mxu0 0.0
    %334 = vmatprep.subr.mxu0 0.0
    %335 = vmatpush1.msra.mxu0 0.0
    %336 = vmatprep.mubr.f32.mxu0 0.0
    %337 = vmatmul.mubr.f32.gmra.mrb[0].mxu0 %v249
    %v338 = vpop.f32.mrb[0].mxu0
    %v339 = vadd.f32 %v271, %v338
    %v340 = vpop.f32.mrb[0].mxu0
    %341 = vdwg.mxu0
    %v342 = vmax.f32 %v339, 0.0
    %v343 = vld [vmem:[#allocation7] sm:$0xff]
    %v344 = vld [vmem:[#allocation7 + $0x8] sm:$0xff]
    %v345 = vld [vmem:[#allocation7 + $0x10] sm:$0xff]
    %v346 = vld [vmem:[#allocation7 + $0x18] sm:$0xff]
    %v347 = vld [vmem:[#allocation7 + $0x20] sm:$0xff]
    %v348 = vld [vmem:[#allocation7 + $0x28] sm:$0xff]
    %v349 = vld [vmem:[#allocation7 + $0x30] sm:$0xff]
    %v350 = vld [vmem:[#allocation7 + $0x38] sm:$0xff]
    %v351 = vld [vmem:[#allocation7 + $0x40] sm:$0xff]
    %v352 = vld [vmem:[#allocation7 + $0x48] sm:$0xff]
    %v353 = vld [vmem:[#allocation7 + $0x50] sm:$0xff]
    %v354 = vld [vmem:[#allocation7 + $0x58] sm:$0xff]
    %v355 = vld [vmem:[#allocation7 + $0x60] sm:$0xff]
    %v356 = vld [vmem:[#allocation7 + $0x68] sm:$0xff]
    %v357 = vld [vmem:[#allocation7 + $0x70] sm:$0xff]
    %v358 = vld [vmem:[#allocation7 + $0x78] sm:$0xff]
    %v359 = vld [vmem:[%s5] sm:$0x1]
    %v361 = vlaneseq
    %v362 = vshrl.u32 %v361, 7
    %v363 = vsub.s32 0, %v362
    %v364 = vrot.slane %v359, %v363
    %366 = vmatprep.subr.mxu0 0.0
    %367 = vmatpush1.msra.mxu0 %v343
    %368 = vmatprep.subr.mxu0 0.0
    %369 = vmatpush1.msra.mxu0 %v344
    %370 = vmatprep.subr.mxu0 0.0
    %371 = vmatpush1.msra.mxu0 %v345
    %372 = vmatprep.subr.mxu0 0.0
    %373 = vmatpush1.msra.mxu0 %v346
    %374 = vmatprep.subr.mxu0 0.0
    %375 = vmatpush1.msra.mxu0 %v347
    %376 = vmatprep.subr.mxu0 0.0
    %377 = vmatpush1.msra.mxu0 %v348
    %378 = vmatprep.subr.mxu0 0.0
    %379 = vmatpush1.msra.mxu0 %v349
    %380 = vmatprep.subr.mxu0 0.0
    %381 = vmatpush1.msra.mxu0 %v350
    %382 = vmatprep.subr.mxu0 0.0
    %383 = vmatpush1.msra.mxu0 %v351
    %384 = vmatprep.subr.mxu0 0.0
    %385 = vmatpush1.msra.mxu0 %v352
    %386 = vmatprep.subr.mxu0 0.0
    %387 = vmatpush1.msra.mxu0 %v353
    %388 = vmatprep.subr.mxu0 0.0
    %389 = vmatpush1.msra.mxu0 %v354
    %390 = vmatprep.subr.mxu0 0.0
    %391 = vmatpush1.msra.mxu0 %v355
    %392 = vmatprep.subr.mxu0 0.0
    %393 = vmatpush1.msra.mxu0 %v356
    %394 = vmatprep.subr.mxu0 0.0
    %395 = vmatpush1.msra.mxu0 %v357
    %396 = vmatprep.subr.mxu0 0.0
    %397 = vmatpush1.msra.mxu0 %v358
    %398 = vmatprep.subr.mxu0 0.0
    %399 = vmatpush1.msra.mxu0 0.0
    %400 = vmatprep.subr.mxu0 0.0
    %401 = vmatpush1.msra.mxu0 0.0
    %402 = vmatprep.subr.mxu0 0.0
    %403 = vmatpush1.msra.mxu0 0.0
    %404 = vmatprep.subr.mxu0 0.0
    %405 = vmatpush1.msra.mxu0 0.0
    %406 = vmatprep.subr.mxu0 0.0
    %407 = vmatpush1.msra.mxu0 0.0
    %408 = vmatprep.subr.mxu0 0.0
    %409 = vmatpush1.msra.mxu0 0.0
    %410 = vmatprep.subr.mxu0 0.0
    %411 = vmatpush1.msra.mxu0 0.0
    %412 = vmatprep.subr.mxu0 0.0
    %413 = vmatpush1.msra.mxu0 0.0
    %414 = vmatprep.subr.mxu0 0.0
    %415 = vmatpush1.msra.mxu0 0.0
    %416 = vmatprep.subr.mxu0 0.0
    %417 = vmatpush1.msra.mxu0 0.0
    %418 = vmatprep.subr.mxu0 0.0
    %419 = vmatpush1.msra.mxu0 0.0
    %420 = vmatprep.subr.mxu0 0.0
    %421 = vmatpush1.msra.mxu0 0.0
    %422 = vmatprep.subr.mxu0 0.0
    %423 = vmatpush1.msra.mxu0 0.0
    %424 = vmatprep.subr.mxu0 0.0
    %425 = vmatpush1.msra.mxu0 0.0
    %426 = vmatprep.subr.mxu0 0.0
    %427 = vmatpush1.msra.mxu0 0.0
    %428 = vmatprep.subr.mxu0 0.0
    %429 = vmatpush1.msra.mxu0 0.0
    %430 = vmatprep.mubr.f32.mxu0 0.0
    %431 = vmatmul.mubr.f32.gmra.mrb[0].mxu0 %v342
    %v432 = vpop.f32.mrb[0].mxu0
    %v433 = vadd.f32 %v364, %v432
    %v434 = vpop.f32.mrb[0].mxu0
    %435 = vdwg.mxu0
    %436 = vst [vmem:[#allocation8] sm:$0xff] %v433
    // Predicated region
    $region38: #{deepnn_forward.1} parent=1 // pred_check
      _
    $region39: #{deepnn_forward.1} parent=1 // pred_check_branch
      %438 = sbr.rel (0) target = $region41
    $region40: #{deepnn_forward.1} parent=1 // pred_region
      %s440 = ssub.s32 128, 128
      %441 = vsyncadd [#allocation4], %s440
      %s443 = sshll.u32 [#allocation8], 4
      %s444 = int_to_ptr.vmem [resolvable:$true] %s443
      %446 = dma.vmem_to_hbm [thread:$0]  %s444, 128, %s6, [#allocation4]
    $region41: #{deepnn_forward.1} parent=1 // pred_fallthru
      _
    // Predicated region
    $region42: #{deepnn_forward.1} parent=1 // pred_check
      _
    $region43: #{deepnn_forward.1} parent=1 // pred_check_branch
      %448 = sbr.rel (0) target = $region45
    $region44: #{deepnn_forward.1} parent=1 // pred_region
      %449 = dma.done [#allocation4], 128
    $region45: #{deepnn_forward.1} parent=1 // pred_fallthru
      _
    %450 = vsyncpa [#allocation3], 1
    %451 = vsyncpa [#allocation6], 1
    %452 = vsyncpa [#allocation4], 1

</llo_original>
